<compile_context>
chip_gen: v7x
topology: tpu7x:2x2x1
jax: 0.10.0
libtpu: 0.0.40
codegen_flags: <defaults>
</compile_context>

<pallas_src>
import functools

import jax
import jax.numpy as jnp
from jax.experimental import pallas as pl
from jax.experimental.pallas import tpu as pltpu


def _aapool_kernel(x_ref, w_ref, b_ref, o_ref,
                   m_sc, l_sc, ctx_sc, mx_sc, *, total_hw):
    # x_ref: [Nb, C, T] (native dtype)   w_ref: [C, 1] f32   b_ref: (1,) f32 SMEM
    # o_ref: [Nb, C, 1]
    # scratch: m_sc/l_sc [Nb,1,1] f32, ctx_sc/mx_sc [Nb,C,1] f32
    k = pl.program_id(1)
    num_k = pl.num_programs(1)
    t = x_ref.shape[-1]
    needs_mask = (total_hw % t) != 0          # trace-time Python bool

    @pl.when(k == 0)
    def _init():
        m_sc[...] = jnp.full(m_sc.shape, -jnp.inf, jnp.float32)
        l_sc[...] = jnp.zeros(l_sc.shape, jnp.float32)
        ctx_sc[...] = jnp.zeros(ctx_sc.shape, jnp.float32)
        mx_sc[...] = jnp.full(mx_sc.shape, -jnp.inf, jnp.float32)

    w = w_ref[...].astype(jnp.float32)        # [C, 1]
    b = b_ref[0]                              # scalar (SMEM)

    def update(masked):
        x_nat = x_ref[...]                                    # [Nb, C, T] native
        x = x_nat.astype(jnp.float32)

        if masked:
            pos = k * t + jax.lax.broadcasted_iota(jnp.int32, (1, 1, t), 2)
            valid = pos < total_hw                            # [1, 1, T]

        # 1x1 conv over channels on the VPU/XLU (broadcast-mul + sublane reduce).
        logits = jnp.sum(w[None, :, :] * x, axis=1, keepdims=True) + b  # [Nb,1,T]
        if masked:
            logits = jnp.where(valid, logits, -jnp.inf)

        # --- online softmax over the spatial axis (kept un-normalized) ---
        m_prev = m_sc[...]                                               # [Nb,1,1]
        m_new = jnp.maximum(m_prev, jnp.max(logits, axis=-1, keepdims=True))
        alpha = jnp.exp(m_prev - m_new)                                  # [Nb,1,1]
        e = jnp.exp(logits - m_new)                                      # [Nb,1,T]

        if masked:
            # Padded lanes may hold NaN/Inf bit patterns; zero them before the
            # weighted sum (e is already 0 there via the -inf logits).
            x_ctx = jnp.where(valid, x, 0.0)
        else:
            x_ctx = x

        l_sc[...] = alpha * l_sc[...] + jnp.sum(e, axis=-1, keepdims=True)
        ctx_sc[...] = alpha * ctx_sc[...] + jnp.sum(x_ctx * e, axis=-1,
                                                    keepdims=True)
        m_sc[...] = m_new

        # --- adaptive max pool to 1x1 ---
        if masked:
            tile_max = jnp.max(jnp.where(valid, x, -jnp.inf),
                               axis=-1, keepdims=True)
        else:
            # Max is exact in the native dtype (2x elems/cycle for bf16 on the
            # v6e/v7x VPU; harmless upcast on v5e).
            tile_max = jnp.max(x_nat, axis=-1, keepdims=True).astype(jnp.float32)
        mx_sc[...] = jnp.maximum(mx_sc[...], tile_max)

    if not needs_mask:
        update(masked=False)
    else:
        @pl.when(k < num_k - 1)
        def _steady():
            update(masked=False)

        @pl.when(k == num_k - 1)
        def _last():
            update(masked=True)

    @pl.when(k == num_k - 1)
    def _finalize():
        inv_l = pl.reciprocal(l_sc[...], approx=True)                  # EUP slot
        o_ref[...] = (ctx_sc[...] * inv_l + mx_sc[...]).astype(o_ref.dtype)


def aa_pooling(x_nchw, conv_w, conv_b, *, hw_tile=None, batch_tile=None):
    """x_nchw: [N, C, H, W]; conv_w: [1, C, 1, 1]; conv_b: [1]. Returns [N, C, 1, 1]."""
    N, C, H, W = x_nchw.shape
    HW = H * W
    x = x_nchw.reshape(N, C, HW)                 # native dtype; no upcast HBM copy
    w = conv_w.reshape(C, 1).astype(jnp.float32)
    b = conv_b.reshape(1).astype(jnp.float32)

    itemsize = jnp.dtype(x.dtype).itemsize

    # --- per-generation VMEM limit (v5e/v6e: 128 MiB phys -> 96 MiB; v7x: 64 -> 48) ---
    try:
        physical_vmem = int(pltpu.get_tpu_info().vmem_capacity_bytes)
    except Exception:
        physical_vmem = 64 * 1024 * 1024          # conservative fallback
    vmem_limit = max(32 * 1024 * 1024,
                     min(physical_vmem * 3 // 4, 96 * 1024 * 1024))
    usable = int(vmem_limit * 0.6)                # headroom for compiler scratch

    X_BLOCK_MAX = 8 * 1024 * 1024                 # per-buffer x block (roofline knee)
    DMA_TARGET = 4 * 1024 * 1024                  # per-grid-step DMA target

    if hw_tile is None:
        t_max = max(128, (X_BLOCK_MAX // max(C * itemsize, 1)) // 128 * 128)
        hw_tile = HW if HW <= t_max else t_max
    hw_tile = min(hw_tile, HW)
    assert hw_tile == HW or hw_tile % 128 == 0, \
        "hw_tile must be HW or a multiple of 128"

    if batch_tile is None:
        row_bytes = C * hw_tile * itemsize
        batch_tile = int(max(1, min(N, DMA_TARGET // max(row_bytes, 1))))
    batch_tile = max(1, min(batch_tile, N))

    # --- VMEM accounting, including lane/sublane padding of small blocks ---
    c_sub = -(-C // 8) * 8

    def vmem_usage(bt, hwt):
        hw_pad = -(-hwt // 128) * 128
        x_bytes = 2 * bt * c_sub * hw_pad * itemsize          # double-buffered x
        scr_small = 2 * bt * 8 * 128 * 4                      # m, l  (lane-padded)
        scr_big = 2 * bt * c_sub * 128 * 4                    # ctx, mx
        w_bytes = 2 * c_sub * 128 * 4                         # weight (double-buf)
        o_bytes = 2 * bt * c_sub * 128 * itemsize             # output block
        return x_bytes + scr_small + scr_big + w_bytes + o_bytes

    while batch_tile > 1 and vmem_usage(batch_tile, hw_tile) > usable:
        batch_tile -= 1
    while vmem_usage(batch_tile, hw_tile) > usable and hw_tile > 128:
        new_t = ((hw_tile - 1) // 128) * 128
        if new_t < 128:
            break
        hw_tile = new_t

    grid = (pl.cdiv(N, batch_tile), pl.cdiv(HW, hw_tile))

    out = pl.pallas_call(
        functools.partial(_aapool_kernel, total_hw=HW),
        out_shape=jax.ShapeDtypeStruct((N, C, 1), x.dtype),
        grid_spec=pltpu.PrefetchScalarGridSpec(
            num_scalar_prefetch=0,
            grid=grid,
            in_specs=[
                pl.BlockSpec((batch_tile, C, hw_tile), lambda n, k: (n, 0, k)),
                pl.BlockSpec((C, 1), lambda n, k: (0, 0)),
                pl.BlockSpec(memory_space=pltpu.MemorySpace.SMEM),
            ],
            out_specs=pl.BlockSpec((batch_tile, C, 1), lambda n, k: (n, 0, 0)),
            scratch_shapes=[
                pltpu.VMEM((batch_tile, 1, 1), jnp.float32),   # running logit max m
                pltpu.VMEM((batch_tile, 1, 1), jnp.float32),   # running exp-sum l
                pltpu.VMEM((batch_tile, C, 1), jnp.float32),   # un-normalized context
                pltpu.VMEM((batch_tile, C, 1), jnp.float32),   # running channel max
            ],
        ),
        compiler_params=pltpu.CompilerParams(
            dimension_semantics=("parallel", "arbitrary"),
            vmem_limit_bytes=vmem_limit),
    )(x, w, b)
    return out.reshape(N, C, 1, 1)


def aa_pooling_ref(x_nchw, conv_w, conv_b):
    N, C, H, W = x_nchw.shape
    x = x_nchw.reshape(N, C, H * W).astype(jnp.float32)
    logits = jnp.einsum("c,nch->nh", conv_w.reshape(C).astype(jnp.float32), x)
    logits = logits + conv_b.astype(jnp.float32).reshape(())
    attn = jax.nn.softmax(logits, axis=-1)                  # [N, HW]
    context = jnp.einsum("nch,nh->nc", x, attn)             # [N, C]
    max_x = jnp.max(x, axis=-1)                             # [N, C]
    return (context + max_x).reshape(N, C, 1, 1).astype(x_nchw.dtype)


if __name__ == "__main__":
    key = jax.random.PRNGKey(0)
    kx, kw, kb = jax.random.split(key, 3)

    # Primary check at the module's reference shape (single tile, no masking).
    N, C, H, W = 2, 4, 16, 16
    x = jax.random.normal(kx, (N, C, H, W), dtype=jnp.float32)
    conv_w = jax.random.normal(kw, (1, C, 1, 1), dtype=jnp.float32) * 0.1
    conv_b = jax.random.normal(kb, (1,), dtype=jnp.float32) * 0.1

    out = jax.block_until_ready(aa_pooling(x, conv_w, conv_b))
    ref = aa_pooling_ref(x, conv_w, conv_b)
    assert out.shape == (N, C, 1, 1)
    assert jnp.allclose(out, ref, atol=2e-3, rtol=2e-3), (out, ref)

    # Secondary check: bf16 input, non-128-aligned spatial size (partial last HW
    # tile -> masked epilogue path) and N % batch_tile != 0 (partial batch
    # block), forcing the tiled online-softmax + masking + writeback-clip paths.
    N2, C2, H2, W2 = 3, 8, 13, 11          # HW = 143 -> 128-wide tile + 15 tail
    x2 = jax.random.normal(kx, (N2, C2, H2, W2), dtype=jnp.float32).astype(jnp.bfloat16)
    w2 = jax.random.normal(kw, (1, C2, 1, 1), dtype=jnp.float32) * 0.1
    b2 = jax.random.normal(kb, (1,), dtype=jnp.float32) * 0.1
    out2 = jax.block_until_ready(aa_pooling(x2, w2, b2, hw_tile=128, batch_tile=2))
    ref2 = aa_pooling_ref(x2, w2, b2)
    assert jnp.allclose(out2.astype(jnp.float32), ref2.astype(jnp.float32),
                        atol=1e-2, rtol=1e-2), (out2, ref2)

    print("KERNEL_OK")
</pallas_src>

<mosaic_0001>
module attributes {stable_mosaic.version = 11 : i64} {
  func.func @_aapool_kernel(%arg0: i32, %arg1: i32, %arg2: memref<2x4x256xf32, #tpu.memory_space<vmem>>, %arg3: memref<4x1xf32, #tpu.memory_space<vmem>>, %arg4: memref<1xf32, #tpu.memory_space<smem>>, %arg5: memref<2x4x1xf32, #tpu.memory_space<vmem>>, %arg6: memref<2x1x1xf32, #tpu.memory_space<vmem>>, %arg7: memref<2x1x1xf32, #tpu.memory_space<vmem>>, %arg8: memref<2x4x1xf32, #tpu.memory_space<vmem>>, %arg9: memref<2x4x1xf32, #tpu.memory_space<vmem>>) attributes {dimension_semantics = [#tpu.dimension_semantics<parallel>, #tpu.dimension_semantics<arbitrary>], iteration_bounds = array<i64: 1, 1>, scalar_prefetch = 0 : i64, scratch_operands = 4 : i64, tpu.core_type = #tpu.core_type<tc>, window_params = [{transform_indices = @transform_0, window_bounds = array<i64: 2, 4, 256>}, {pipeline_mode = #tpu.pipeline_mode<synchronous>, transform_indices = @transform_1, window_bounds = array<i64: 4, 1>}, {transform_indices = @transform_2, window_bounds = array<i64: 1>}, {transform_indices = @transform_3, window_bounds = array<i64: 2, 4, 1>}]} {
    %c0_i32 = arith.constant 0 : i32
    %0 = arith.cmpi eq, %arg1, %c0_i32 : i32
    %1 = arith.extui %0 : i1 to i32
    %c0_i32_0 = arith.constant 0 : i32
    %2 = arith.cmpi ne, %1, %c0_i32_0 : i32
    scf.if %2 {
      %cst_36 = arith.constant 0xFF800000 : f32
      %46 = vector.broadcast %cst_36 : f32 to vector<2x1x1xf32>
      %c0_37 = arith.constant 0 : index
      %c0_38 = arith.constant 0 : index
      %c0_39 = arith.constant 0 : index
      %47 = vector.load %arg6[%c0_37, %c0_38, %c0_39] : memref<2x1x1xf32, #tpu.memory_space<vmem>>, vector<2x1x1xf32>
      tpu.vector_store %arg6[%c0_37, %c0_38, %c0_39], %46 {strides = array<i32>} : memref<2x1x1xf32, #tpu.memory_space<vmem>>, vector<2x1x1xf32>,
      %cst_40 = arith.constant 0.000000e+00 : f32
      %48 = vector.broadcast %cst_40 : f32 to vector<2x1x1xf32>
      %c0_41 = arith.constant 0 : index
      %c0_42 = arith.constant 0 : index
      %c0_43 = arith.constant 0 : index
      %49 = vector.load %arg7[%c0_41, %c0_42, %c0_43] : memref<2x1x1xf32, #tpu.memory_space<vmem>>, vector<2x1x1xf32>
      tpu.vector_store %arg7[%c0_41, %c0_42, %c0_43], %48 {strides = array<i32>} : memref<2x1x1xf32, #tpu.memory_space<vmem>>, vector<2x1x1xf32>,
      %cst_44 = arith.constant 0.000000e+00 : f32
      %50 = vector.broadcast %cst_44 : f32 to vector<2x4x1xf32>
      %c0_45 = arith.constant 0 : index
      %c0_46 = arith.constant 0 : index
      %c0_47 = arith.constant 0 : index
      %51 = vector.load %arg8[%c0_45, %c0_46, %c0_47] : memref<2x4x1xf32, #tpu.memory_space<vmem>>, vector<2x4x1xf32>
      tpu.vector_store %arg8[%c0_45, %c0_46, %c0_47], %50 {strides = array<i32>} : memref<2x4x1xf32, #tpu.memory_space<vmem>>, vector<2x4x1xf32>,
      %cst_48 = arith.constant 0xFF800000 : f32
      %52 = vector.broadcast %cst_48 : f32 to vector<2x4x1xf32>
      %c0_49 = arith.constant 0 : index
      %c0_50 = arith.constant 0 : index
      %c0_51 = arith.constant 0 : index
      %53 = vector.load %arg9[%c0_49, %c0_50, %c0_51] : memref<2x4x1xf32, #tpu.memory_space<vmem>>, vector<2x4x1xf32>
      tpu.vector_store %arg9[%c0_49, %c0_50, %c0_51], %52 {strides = array<i32>} : memref<2x4x1xf32, #tpu.memory_space<vmem>>, vector<2x4x1xf32>,
    } else {
    }
    %c0 = arith.constant 0 : index
    %c0_1 = arith.constant 0 : index
    %3 = vector.load %arg3[%c0, %c0_1] : memref<4x1xf32, #tpu.memory_space<vmem>>, vector<4x1xf32>
    %c0_2 = arith.constant 0 : index
    %4 = memref.load %arg4[%c0_2] : memref<1xf32, #tpu.memory_space<smem>>
    %c0_3 = arith.constant 0 : index
    %c0_4 = arith.constant 0 : index
    %c0_5 = arith.constant 0 : index
    %5 = vector.load %arg2[%c0_3, %c0_4, %c0_5] : memref<2x4x256xf32, #tpu.memory_space<vmem>>, vector<2x4x256xf32>
    %6 = vector.shape_cast %3 : vector<4x1xf32> to vector<1x4x1xf32>
    %7 = vector.broadcast %6 : vector<1x4x1xf32> to vector<2x4x256xf32>
    %8 = arith.mulf %7, %5 : vector<2x4x256xf32>
    %cst = arith.constant dense<0.000000e+00> : vector<2x256xf32>
    %9 = vector.multi_reduction <add>, %8, %cst [1] : vector<2x4x256xf32> to vector<2x256xf32>
    %10 = vector.shape_cast %9 : vector<2x256xf32> to vector<2x1x256xf32>
    %11 = vector.broadcast %4 : f32 to vector<2x1x256xf32>
    %12 = arith.addf %10, %11 : vector<2x1x256xf32>
    %c0_6 = arith.constant 0 : index
    %c0_7 = arith.constant 0 : index
    %c0_8 = arith.constant 0 : index
    %13 = vector.load %arg6[%c0_6, %c0_7, %c0_8] : memref<2x1x1xf32, #tpu.memory_space<vmem>>, vector<2x1x1xf32>
    %cst_9 = arith.constant dense<0xFF800000> : vector<2x1xf32>
    %14 = vector.multi_reduction <maximumf>, %12, %cst_9 [2] : vector<2x1x256xf32> to vector<2x1xf32>
    %15 = vector.shape_cast %14 : vector<2x1xf32> to vector<2x1x1xf32>
    %16 = arith.maximumf %13, %15 : vector<2x1x1xf32>
    %17 = arith.subf %13, %16 : vector<2x1x1xf32>
    %18 = math.exp %17 : vector<2x1x1xf32>
    %19 = vector.broadcast %16 : vector<2x1x1xf32> to vector<2x1x256xf32>
    %20 = arith.subf %12, %19 : vector<2x1x256xf32>
    %21 = math.exp %20 : vector<2x1x256xf32>
    %c0_10 = arith.constant 0 : index
    %c0_11 = arith.constant 0 : index
    %c0_12 = arith.constant 0 : index
    %22 = vector.load %arg7[%c0_10, %c0_11, %c0_12] : memref<2x1x1xf32, #tpu.memory_space<vmem>>, vector<2x1x1xf32>
    %23 = arith.mulf %18, %22 : vector<2x1x1xf32>
    %cst_13 = arith.constant dense<0.000000e+00> : vector<2x1xf32>
    %24 = vector.multi_reduction <add>, %21, %cst_13 [2] : vector<2x1x256xf32> to vector<2x1xf32>
    %25 = vector.shape_cast %24 : vector<2x1xf32> to vector<2x1x1xf32>
    %26 = arith.addf %23, %25 : vector<2x1x1xf32>
    %c0_14 = arith.constant 0 : index
    %c0_15 = arith.constant 0 : index
    %c0_16 = arith.constant 0 : index
    %27 = vector.load %arg7[%c0_14, %c0_15, %c0_16] : memref<2x1x1xf32, #tpu.memory_space<vmem>>, vector<2x1x1xf32>
    tpu.vector_store %arg7[%c0_14, %c0_15, %c0_16], %26 {strides = array<i32>} : memref<2x1x1xf32, #tpu.memory_space<vmem>>, vector<2x1x1xf32>,
    %c0_17 = arith.constant 0 : index
    %c0_18 = arith.constant 0 : index
    %c0_19 = arith.constant 0 : index
    %28 = vector.load %arg8[%c0_17, %c0_18, %c0_19] : memref<2x4x1xf32, #tpu.memory_space<vmem>>, vector<2x4x1xf32>
    %29 = vector.broadcast %18 : vector<2x1x1xf32> to vector<2x4x1xf32>
    %30 = arith.mulf %29, %28 : vector<2x4x1xf32>
    %31 = vector.broadcast %21 : vector<2x1x256xf32> to vector<2x4x256xf32>
    %32 = arith.mulf %5, %31 : vector<2x4x256xf32>
    %cst_20 = arith.constant dense<0.000000e+00> : vector<2x4xf32>
    %33 = vector.multi_reduction <add>, %32, %cst_20 [2] : vector<2x4x256xf32> to vector<2x4xf32>
    %34 = vector.shape_cast %33 : vector<2x4xf32> to vector<2x4x1xf32>
    %35 = arith.addf %30, %34 : vector<2x4x1xf32>
    %c0_21 = arith.constant 0 : index
    %c0_22 = arith.constant 0 : index
    %c0_23 = arith.constant 0 : index
    %36 = vector.load %arg8[%c0_21, %c0_22, %c0_23] : memref<2x4x1xf32, #tpu.memory_space<vmem>>, vector<2x4x1xf32>
    tpu.vector_store %arg8[%c0_21, %c0_22, %c0_23], %35 {strides = array<i32>} : memref<2x4x1xf32, #tpu.memory_space<vmem>>, vector<2x4x1xf32>,
    %c0_24 = arith.constant 0 : index
    %c0_25 = arith.constant 0 : index
    %c0_26 = arith.constant 0 : index
    %37 = vector.load %arg6[%c0_24, %c0_25, %c0_26] : memref<2x1x1xf32, #tpu.memory_space<vmem>>, vector<2x1x1xf32>
    tpu.vector_store %arg6[%c0_24, %c0_25, %c0_26], %16 {strides = array<i32>} : memref<2x1x1xf32, #tpu.memory_space<vmem>>, vector<2x1x1xf32>,
    %cst_27 = arith.constant dense<0xFF800000> : vector<2x4xf32>
    %38 = vector.multi_reduction <maximumf>, %5, %cst_27 [2] : vector<2x4x256xf32> to vector<2x4xf32>
    %39 = vector.shape_cast %38 : vector<2x4xf32> to vector<2x4x1xf32>
    %c0_28 = arith.constant 0 : index
    %c0_29 = arith.constant 0 : index
    %c0_30 = arith.constant 0 : index
    %40 = vector.load %arg9[%c0_28, %c0_29, %c0_30] : memref<2x4x1xf32, #tpu.memory_space<vmem>>, vector<2x4x1xf32>
    %41 = arith.maximumf %40, %39 : vector<2x4x1xf32>
    %c0_31 = arith.constant 0 : index
    %c0_32 = arith.constant 0 : index
    %c0_33 = arith.constant 0 : index
    %42 = vector.load %arg9[%c0_31, %c0_32, %c0_33] : memref<2x4x1xf32, #tpu.memory_space<vmem>>, vector<2x4x1xf32>
    tpu.vector_store %arg9[%c0_31, %c0_32, %c0_33], %41 {strides = array<i32>} : memref<2x4x1xf32, #tpu.memory_space<vmem>>, vector<2x4x1xf32>,
    %c0_i32_34 = arith.constant 0 : i32
    %43 = arith.cmpi eq, %arg1, %c0_i32_34 : i32
    %44 = arith.extui %43 : i1 to i32
    %c0_i32_35 = arith.constant 0 : i32
    %45 = arith.cmpi ne, %44, %c0_i32_35 : i32
    scf.if %45 {
      %c0_36 = arith.constant 0 : index
      %c0_37 = arith.constant 0 : index
      %c0_38 = arith.constant 0 : index
      %46 = vector.load %arg7[%c0_36, %c0_37, %c0_38] : memref<2x1x1xf32, #tpu.memory_space<vmem>>, vector<2x1x1xf32>
      %47 = tpu.reciprocal %46 {approx = true} : vector<2x1x1xf32> -> vector<2x1x1xf32>
      %c0_39 = arith.constant 0 : index
      %c0_40 = arith.constant 0 : index
      %c0_41 = arith.constant 0 : index
      %48 = vector.load %arg8[%c0_39, %c0_40, %c0_41] : memref<2x4x1xf32, #tpu.memory_space<vmem>>, vector<2x4x1xf32>
      %49 = vector.broadcast %47 : vector<2x1x1xf32> to vector<2x4x1xf32>
      %50 = arith.mulf %48, %49 : vector<2x4x1xf32>
      %c0_42 = arith.constant 0 : index
      %c0_43 = arith.constant 0 : index
      %c0_44 = arith.constant 0 : index
      %51 = vector.load %arg9[%c0_42, %c0_43, %c0_44] : memref<2x4x1xf32, #tpu.memory_space<vmem>>, vector<2x4x1xf32>
      %52 = arith.addf %50, %51 : vector<2x4x1xf32>
      %c0_45 = arith.constant 0 : index
      %c0_46 = arith.constant 0 : index
      %c0_47 = arith.constant 0 : index
      %53 = vector.load %arg5[%c0_45, %c0_46, %c0_47] : memref<2x4x1xf32, #tpu.memory_space<vmem>>, vector<2x4x1xf32>
      tpu.vector_store %arg5[%c0_45, %c0_46, %c0_47], %52 {strides = array<i32>} : memref<2x4x1xf32, #tpu.memory_space<vmem>>, vector<2x4x1xf32>,
    } else {
    }
    return
  }
  func.func @transform_0(%arg0: i32, %arg1: i32) -> (i32, i32, i32) {
    %c0_i32 = arith.constant 0 : i32
    %c0_i32_0 = arith.constant 0 : i32
    return %arg0, %c0_i32, %arg1 : i32, i32, i32
  }
  func.func @transform_1(%arg0: i32, %arg1: i32) -> (i32, i32) {
    %c0_i32 = arith.constant 0 : i32
    %c0_i32_0 = arith.constant 0 : i32
    %c0_i32_1 = arith.constant 0 : i32
    return %c0_i32, %c0_i32_0 : i32, i32
  }
  func.func @transform_2(%arg0: i32, %arg1: i32) -> i32 {
    %c0_i32 = arith.constant 0 : i32
    %c0_i32_0 = arith.constant 0 : i32
    return %c0_i32 : i32
  }
  func.func @transform_3(%arg0: i32, %arg1: i32) -> (i32, i32, i32) {
    %c0_i32 = arith.constant 0 : i32
    %c0_i32_0 = arith.constant 0 : i32
    %c0_i32_1 = arith.constant 0 : i32
    return %arg0, %c0_i32, %c0_i32_0 : i32, i32, i32
  }
}

</mosaic_0001>

<llo_original>
// kernel: tpu_custom_call.1
$region0: #{tpu_custom_call.1}
  #allocation0 [shape = 'u32[]', space=smem, size = 0x4, offset = 0x4, fixed_abs, tag = 'smem constant byte address 0x4 - core index']
  #allocation1 [shape = 'u32[144,128]{1,0:T(1,128)}', space=vmem, size = 0x12000, scoped, tag = 'internal scratch']
  #allocation2 [shape = 'f32[2,1,1]{2,1,0:T(1,128)}', space=vmem, size = 0x400, scoped, tag = 'scratch operand']
  #allocation3 [shape = 'f32[2,1,1]{2,1,0:T(1,128)}', space=vmem, size = 0x400, scoped, tag = 'scratch operand']
  #allocation4 [shape = 'f32[2,4,1]{2,1,0:T(4,128)}', space=vmem, size = 0x1000, scoped, tag = 'scratch operand']
  #allocation5 [shape = 'f32[2,4,1]{2,1,0:T(4,128)}', space=vmem, size = 0x1000, scoped, tag = 'scratch operand']
  #allocation6 [shape = 'f32[1]{0:T(128)S(6)}', space=smem, size = 0x200, scoped, tag = 'scoped memory for tpu_custom_call.1']
  %s0 = inlined_call_operand.hbm [shape: f32[2,4,256], index: 0, kind: input, shape index: {}]
  %s1 = inlined_call_operand.vmem [shape: f32[4,1], index: 1, kind: input, shape index: {}]
  %s2 = inlined_call_operand.<no memory space> [shape: f32[1], index: 2, kind: input, shape index: {}]
  %s3 = inlined_call_operand.vmem [shape: f32[2,4,1], index: 3, kind: output, shape index: {}]
  %s4 = sld [smem:[#allocation0]]
  $region34: #{tpu_custom_call.1} parent=0
    _
  %s6 = ssub.s32 1, %s4
  %s7 = scalar_select 0, %s6, %s4
  %8 = sst [smem:[#allocation6]] %s2
  $region1: #{tpu_custom_call.1} parent=0
    #allocation7 [shape = 'u8[8192]{0}', space=vmem, size = 0x2000, scoped, tag = 'input window, operand 0, single buffered']
    #allocation8 [shape = 's32[1]{0}', space=sflag, size = 0x4, scoped, tag = 'scoped memory for tpu_custom_call.1']
    %9 = vsyncpa [#allocation8], 0
    // Predicated region
    $region2: #{tpu_custom_call.1} parent=1 // pred_check
      _
    $region3: #{tpu_custom_call.1} parent=1 // pred_check_branch
      %11 = sbr.rel (0) target = $region5
    $region4: #{tpu_custom_call.1} parent=1 // pred_region
      %s13 = ssub.s32 256, 256
      %14 = vsyncadd [#allocation8], %s13
      %s15 = sshll.u32 [#allocation7], 4
      %s16 = int_to_ptr.vmem [resolvable:$true] %s15
      %21 = dma.hbm_to_vmem [thread:$0]  %s0, 256, %s16, [#allocation8], 128, 128, 8
    $region5: #{tpu_custom_call.1} parent=1 // pred_fallthru
      _
    // Predicated region
    $region6: #{tpu_custom_call.1} parent=1 // pred_check
      _
    $region7: #{tpu_custom_call.1} parent=1 // pred_check_branch
      %23 = sbr.rel (0) target = $region9
    $region8: #{tpu_custom_call.1} parent=1 // pred_region
      _
    $region9: #{tpu_custom_call.1} parent=1 // pred_fallthru
      _
    // Predicated region
    $region10: #{tpu_custom_call.1} parent=1 // pred_check
      _
    $region11: #{tpu_custom_call.1} parent=1 // pred_check_branch
      %25 = sbr.rel (0) target = $region13
    $region12: #{tpu_custom_call.1} parent=1 // pred_region
      _
    $region13: #{tpu_custom_call.1} parent=1 // pred_fallthru
      _
    // Predicated region
    $region14: #{tpu_custom_call.1} parent=1 // pred_check
      _
    $region15: #{tpu_custom_call.1} parent=1 // pred_check_branch
      %27 = sbr.rel (0) target = $region17
    $region16: #{tpu_custom_call.1} parent=1 // pred_region
      %28 = dma.done [#allocation8], 256
    $region17: #{tpu_custom_call.1} parent=1 // pred_fallthru
      _
    %p29 = scmp.eq.s32.totalorder 0, 0
    // Predicated region
    $region18: #{tpu_custom_call.1} parent=1 // pred_check
      %p30 = pneg %p29
    $region19: #{tpu_custom_call.1} parent=1 // pred_check_branch
      %32 = sbr.rel (%p30) target = $region21
    $region20: #{tpu_custom_call.1} parent=1 // pred_region
      %vm33 = vcmask 0
      %34 = vst.msk [vmem:[#allocation2] sm:$0x1] %vm33, -inf
      %35 = vst.msk [vmem:[#allocation2 + $0x1] sm:$0x1] %vm33, -inf
      %36 = vst.msk [vmem:[#allocation3] sm:$0x1] %vm33, 0.0
      %37 = vst.msk [vmem:[#allocation3 + $0x1] sm:$0x1] %vm33, 0.0
      %vm38 = vcmask 3072
      %39 = vst.msk [vmem:[#allocation4] sm:$0xf] %vm38, 0.0
      %40 = vst.msk [vmem:[#allocation4 + $0x4] sm:$0xf] %vm38, 0.0
      %41 = vst.msk [vmem:[#allocation5] sm:$0xf] %vm38, -inf
      %42 = vst.msk [vmem:[#allocation5 + $0x4] sm:$0xf] %vm38, -inf
    $region21: #{tpu_custom_call.1} parent=1 // pred_fallthru
      _
    %v43 = vld [vmem:[%s1] sm:$0xf]
    %s44 = sld [smem:[#allocation6]]
    %v45 = vld [vmem:[#allocation7] sm:$0xff]
    %v46 = vld [vmem:[#allocation7 + $0x8] sm:$0xff]
    %48 = vset.pattern.permute.xlu0 0
    %49 = vperm.xlu0 %48, %v43
    %v50 = vpop.permute.xlu0 %49
    %v54 = vcombine.high %v45, %v45
    %v55 = vcombine.high %v46, %v46
    %v58 = vmul.f32 %v50, %v45
    %v59 = vmul.f32 %v50, %v54
    %v60 = vmul.f32 %v50, %v46
    %v61 = vmul.f32 %v50, %v55
    %vm62 = vcmask 1043456
    %v63 = vsel %vm62, %v58, 0.0
    %v64 = vrot.slane %v63, 4
    %v65 = vadd.f32 %v63, %v64
    %v66 = vrot.slane %v65, 2
    %v67 = vadd.f32 %v65, %v66
    %v68 = vrot.slane %v67, 1
    %v69 = vadd.f32 %v67, %v68
    %v70 = vsel %vm62, %v59, 0.0
    %v71 = vrot.slane %v70, 4
    %v72 = vadd.f32 %v70, %v71
    %v73 = vrot.slane %v72, 2
    %v74 = vadd.f32 %v72, %v73
    %v75 = vrot.slane %v74, 1
    %v76 = vadd.f32 %v74, %v75
    %v77 = vsel %vm62, %v60, 0.0
    %v78 = vrot.slane %v77, 4
    %v79 = vadd.f32 %v77, %v78
    %v80 = vrot.slane %v79, 2
    %v81 = vadd.f32 %v79, %v80
    %v82 = vrot.slane %v81, 1
    %v83 = vadd.f32 %v81, %v82
    %v84 = vsel %vm62, %v61, 0.0
    %v85 = vrot.slane %v84, 4
    %v86 = vadd.f32 %v84, %v85
    %v87 = vrot.slane %v86, 2
    %v88 = vadd.f32 %v86, %v87
    %v89 = vrot.slane %v88, 1
    %v90 = vadd.f32 %v88, %v89
    %v91 = vstv %s44
    %v92 = vadd.f32 %v69, %v91
    %v93 = vadd.f32 %v76, %v91
    %v94 = vadd.f32 %v83, %v91
    %v95 = vadd.f32 %v90, %v91
    %v96 = vld [vmem:[#allocation2] sm:$0x1]
    %v97 = vld [vmem:[#allocation2 + $0x1] sm:$0x1]
    %v98 = vmax.f32 %v92, %v93
    %99 = vmax.xlane.f32.xlu0 %v98
    %v100 = vpop.xlane.xlu0 %99
    %v101 = vmax.f32 %v94, %v95
    %102 = vmax.xlane.f32.xlu0 %v101
    %v103 = vpop.xlane.xlu0 %102
    %v104 = vmax.f32 %v96, %v100
    %v105 = vmax.f32 %v97, %v103
    %v106 = vsub.f32 %v96, %v104
    %v107 = vsub.f32 %v97, %v105
    %v108 = vmul.f32 %v106, 1.442695
    %v109 = vpow.pop %v108
    %v110 = vmul.f32 %v107, 1.442695
    %v111 = vpow.pop %v110
    %113 = vset.pattern.permute.xlu0 0
    %114 = vperm.xlu0 %113, %v104
    %v115 = vpop.permute.xlu0 %114
    %v117 = vlaneseq
    %v118 = vshrl.u32 %v117, 7
    %v119 = vsub.s32 0, %v118
    %v120 = vrot.slane %v115, %v119
    %122 = vset.pattern.permute.xlu0 0
    %123 = vperm.xlu0 %122, %v105
    %v124 = vpop.permute.xlu0 %123
    %v126 = vlaneseq
    %v127 = vshrl.u32 %v126, 7
    %v128 = vsub.s32 0, %v127
    %v129 = vrot.slane %v124, %v128
    %v130 = vsub.f32 %v92, %v120
    %v131 = vsub.f32 %v93, %v120
    %v132 = vsub.f32 %v94, %v129
    %v133 = vsub.f32 %v95, %v129
    %v134 = vmul.f32 %v130, 1.442695
    %v135 = vpow.pop %v134
    %v136 = vmul.f32 %v131, 1.442695
    %v137 = vpow.pop %v136
    %v138 = vmul.f32 %v132, 1.442695
    %v139 = vpow.pop %v138
    %v140 = vmul.f32 %v133, 1.442695
    %v141 = vpow.pop %v140
    %v142 = vld [vmem:[#allocation3] sm:$0x1]
    %v143 = vld [vmem:[#allocation3 + $0x1] sm:$0x1]
    %v144 = vmul.f32 %v109, %v142
    %v145 = vmul.f32 %v111, %v143
    %v146 = vadd.f32 %v135, %v137
    %147 = vadd.xlane.f32.xlu0 %v146
    %v148 = vpop.xlane.xlu0 %147
    %v149 = vadd.f32 %v139, %v141
    %150 = vadd.xlane.f32.xlu0 %v149
    %v151 = vpop.xlane.xlu0 %150
    %v152 = vadd.f32 %v144, %v148
    %v153 = vadd.f32 %v145, %v151
    %vm154 = vcmask 0
    %155 = vst.msk [vmem:[#allocation3] sm:$0x1] %vm154, %v152
    %156 = vst.msk [vmem:[#allocation3 + $0x1] sm:$0x1] %vm154, %v153
    %v157 = vld [vmem:[#allocation4] sm:$0xf]
    %v158 = vld [vmem:[#allocation4 + $0x4] sm:$0xf]
    %v161 = vlaneseq
    %v162 = vshrl.u32 %v161, 7
    %v163 = vsub.s32 0, %v162
    %v164 = vrot.slane %v109, %v163
    %v165 = vlaneseq
    %v166 = vshrl.u32 %v165, 7
    %v167 = vsub.s32 0, %v166
    %v168 = vrot.slane %v111, %v167
    %v171 = vmul.f32 %v164, %v157
    %v172 = vmul.f32 %v168, %v158
    %v177 = vcombine.low %v135, %v137
    %v178 = vcombine.low %v139, %v141
    %v181 = vmul.f32 %v45, %v177
    %v182 = vmul.f32 %v46, %v178
    %v185 = vcombine.high %v181, %v181
    %v186 = vcombine.high %v182, %v182
    %v189 = vsel %vm62, %v181, 0.0
    %v190 = vsel %vm62, %v185, 0.0
    %v191 = vadd.f32 %v189, %v190
    %192 = vadd.xlane.f32.xlu0 %v191
    %v193 = vpop.xlane.xlu0 %192
    %v194 = vsel %vm62, %v182, 0.0
    %v195 = vsel %vm62, %v186, 0.0
    %v196 = vadd.f32 %v194, %v195
    %197 = vadd.xlane.f32.xlu0 %v196
    %v198 = vpop.xlane.xlu0 %197
    %v199 = vadd.f32 %v171, %v193
    %v200 = vadd.f32 %v172, %v198
    %vm201 = vcmask 3072
    %202 = vst.msk [vmem:[#allocation4] sm:$0xf] %vm201, %v199
    %203 = vst.msk [vmem:[#allocation4 + $0x4] sm:$0xf] %vm201, %v200
    %204 = vst.msk [vmem:[#allocation2] sm:$0x1] %vm154, %v104
    %205 = vst.msk [vmem:[#allocation2 + $0x1] sm:$0x1] %vm154, %v105
    %v206 = vsel %vm62, %v45, -inf
    %v207 = vsel %vm62, %v54, -inf
    %v208 = vmax.f32 %v206, %v207
    %209 = vmax.xlane.f32.xlu0 %v208
    %v210 = vpop.xlane.xlu0 %209
    %v211 = vsel %vm62, %v46, -inf
    %v212 = vsel %vm62, %v55, -inf
    %v213 = vmax.f32 %v211, %v212
    %214 = vmax.xlane.f32.xlu0 %v213
    %v215 = vpop.xlane.xlu0 %214
    %v216 = vld [vmem:[#allocation5] sm:$0xf]
    %v217 = vld [vmem:[#allocation5 + $0x4] sm:$0xf]
    %v218 = vmax.f32 %v216, %v210
    %v219 = vmax.f32 %v217, %v215
    %220 = vst.msk [vmem:[#allocation5] sm:$0xf] %vm201, %v218
    %221 = vst.msk [vmem:[#allocation5 + $0x4] sm:$0xf] %vm201, %v219
    // Predicated region
    $region22: #{tpu_custom_call.1} parent=1 // pred_check
      %p222 = pneg %p29
    $region23: #{tpu_custom_call.1} parent=1 // pred_check_branch
      %224 = sbr.rel (%p222) target = $region25
    $region24: #{tpu_custom_call.1} parent=1 // pred_region
      %v225 = vld [vmem:[#allocation3] sm:$0x1]
      %v226 = vld [vmem:[#allocation3 + $0x1] sm:$0x1]
      %v227 = vrcp.pop %v225
      %v228 = vrcp.pop %v226
      %v229 = vld [vmem:[#allocation4] sm:$0xf]
      %v230 = vld [vmem:[#allocation4 + $0x4] sm:$0xf]
      %v233 = vlaneseq
      %v234 = vshrl.u32 %v233, 7
      %v235 = vsub.s32 0, %v234
      %v236 = vrot.slane %v227, %v235
      %v237 = vlaneseq
      %v238 = vshrl.u32 %v237, 7
      %v239 = vsub.s32 0, %v238
      %v240 = vrot.slane %v228, %v239
      %v243 = vmul.f32 %v229, %v236
      %v244 = vmul.f32 %v230, %v240
      %v245 = vld [vmem:[#allocation5] sm:$0xf]
      %v246 = vld [vmem:[#allocation5 + $0x4] sm:$0xf]
      %v247 = vadd.f32 %v243, %v245
      %v248 = vadd.f32 %v244, %v246
      %249 = vst.msk [vmem:[%s3] sm:$0xf] %vm201, %v247
      %250 = vst.msk [vmem:[%s3 + $0x4] sm:$0xf] %vm201, %v248
    $region25: #{tpu_custom_call.1} parent=1 // pred_fallthru
      _
    // Predicated region
    $region26: #{tpu_custom_call.1} parent=1 // pred_check
      _
    $region27: #{tpu_custom_call.1} parent=1 // pred_check_branch
      %252 = sbr.rel (0) target = $region29
    $region28: #{tpu_custom_call.1} parent=1 // pred_region
      _
    $region29: #{tpu_custom_call.1} parent=1 // pred_fallthru
      _
    // Predicated region
    $region30: #{tpu_custom_call.1} parent=1 // pred_check
      _
    $region31: #{tpu_custom_call.1} parent=1 // pred_check_branch
      %254 = sbr.rel (0) target = $region33
    $region32: #{tpu_custom_call.1} parent=1 // pred_region
      _
    $region33: #{tpu_custom_call.1} parent=1 // pred_fallthru
      _
    %255 = vsyncpa [#allocation8], 1

</llo_original>
